<compile_context>
chip_gen: v5e
topology: v5e:2x2
jax: 0.10.0
libtpu: 0.0.40
codegen_flags: <defaults>
</compile_context>

<pallas_src>
import functools

import jax
import jax.numpy as jnp
from jax.experimental import pallas as pl
from jax.experimental.pallas import tpu as pltpu

_LANES = 128
_SUBLANES = 8
_TARGET_BLOCK_BYTES = 1 << 20   # ~1 MiB of input per block (per operand)
_NUM_CHUNKS = 2                 # shard the reduction across v7x's two TCs


def _fold_to_vreg(x, tr):
    """(tr, 128) f32 -> (8, 128) f32 with pure VPU adds (no cross-lane XLU)."""
    return jnp.sum(x.reshape(tr // _SUBLANES, _SUBLANES, _LANES), axis=0)


def _l1_partial_kernel(a_ref, b_ref, o_ref, *, tr, valid_rows, steps,
                       needs_mask):
    """Accumulate per-chunk partial sums of |a - b| into an (8, 128) block."""
    c = pl.program_id(0)         # chunk (parallel across TensorCores)
    s = pl.program_id(1)         # reduction step within the chunk

    @pl.when(s == 0)
    def _():
        o_ref[...] = jnp.zeros_like(o_ref)

    absdiff = jnp.abs(a_ref[...].astype(jnp.float32)
                      - b_ref[...].astype(jnp.float32))

    if needs_mask:
        blk = c * steps + s
        # Only the tail block(s) need per-row masking; full blocks skip the
        # iota/compare/select entirely.
        is_tail = (blk + 1) * tr > valid_rows

        @pl.when(is_tail)
        def _():
            row = jax.lax.broadcasted_iota(jnp.int32, (tr, _LANES), 0)
            masked = jnp.where(blk * tr + row < valid_rows, absdiff, 0.0)
            o_ref[...] += _fold_to_vreg(masked, tr)

        @pl.when(jnp.logical_not(is_tail))
        def _():
            o_ref[...] += _fold_to_vreg(absdiff, tr)
    else:
        o_ref[...] += _fold_to_vreg(absdiff, tr)


def cycle_loss(actual, pred, reduction="mean"):
    """Pallas TPU implementation of nn.L1Loss(reduction=reduction)(actual, pred)."""
    if actual.shape != pred.shape:
        raise ValueError("actual and pred must have the same shape")
    if reduction not in ("mean", "sum"):
        # TODO(synk): reduction='none' returns a full-size tensor; only
        # 'mean'/'sum' are implemented here (module default is 'mean').
        raise NotImplementedError(reduction)

    n = actual.size
    a_flat = jnp.ravel(actual)           # keep native dtype; cast in-kernel
    b_flat = jnp.ravel(pred)

    # Minimal lane-alignment pad only when required (zeros in BOTH operands,
    # so padded entries contribute |0-0| = 0 to the sum).
    tile = _SUBLANES * _LANES
    if n < tile:
        padded = tile
    elif n % _LANES:
        padded = pl.cdiv(n, _LANES) * _LANES
    else:
        padded = n
    if padded != n:
        a_flat = jnp.pad(a_flat, (0, padded - n))
        b_flat = jnp.pad(b_flat, (0, padded - n))

    rows = padded // _LANES
    a2 = a_flat.reshape(rows, _LANES)
    b2 = b_flat.reshape(rows, _LANES)

    # Row-tile size: ~1 MiB of the (widest) native input dtype per block,
    # multiple of 8 sublanes, never exceeding the available rows.
    itemsize = max(jnp.dtype(a2.dtype).itemsize, jnp.dtype(b2.dtype).itemsize)
    max_rows = max(_SUBLANES,
                   (_TARGET_BLOCK_BYTES // (itemsize * _LANES) // _SUBLANES)
                   * _SUBLANES)
    tr = min(max_rows, (rows // _SUBLANES) * _SUBLANES)
    row_blocks = pl.cdiv(rows, tr)
    num_chunks = _NUM_CHUNKS if row_blocks >= _NUM_CHUNKS else 1
    steps = pl.cdiv(row_blocks, num_chunks)
    needs_mask = (num_chunks * steps * tr) != rows
    last_block = row_blocks - 1

    def in_map(c, s):
        # Clamp so overflow grid points (when row_blocks % num_chunks != 0)
        # re-read the last valid block instead of issuing an OOB DMA; the
        # in-kernel mask zeroes their contribution.
        return (jnp.minimum(c * steps + s, last_block), 0)

    kernel = functools.partial(
        _l1_partial_kernel, tr=tr, valid_rows=rows, steps=steps,
        needs_mask=needs_mask)

    partials = pl.pallas_call(
        kernel,
        out_shape=jax.ShapeDtypeStruct((num_chunks * _SUBLANES, _LANES),
                                       jnp.float32),
        grid_spec=pltpu.PrefetchScalarGridSpec(
            num_scalar_prefetch=0,
            grid=(num_chunks, steps),
            in_specs=[
                pl.BlockSpec((tr, _LANES), in_map),
                pl.BlockSpec((tr, _LANES), in_map),
            ],
            out_specs=pl.BlockSpec((_SUBLANES, _LANES), lambda c, s: (c, 0)),
        ),
        compiler_params=pltpu.CompilerParams(
            dimension_semantics=("parallel", "arbitrary")),
    )(a2, b2)

    # Single tiny cross-lane/sublane reduce + (optional) mean divide.
    total = jnp.sum(partials)
    if reduction == "mean":
        total = total / jnp.float32(n)
    return total


if __name__ == "__main__":
    key = jax.random.PRNGKey(0)
    k1, k2, k3, k4 = jax.random.split(key, 4)

    # Main check: NCHW shape implied by the module's typical use.
    shape = (2, 4, 16, 16)
    actual = jax.random.normal(k1, shape, dtype=jnp.float32)
    pred = jax.random.normal(k2, shape, dtype=jnp.float32)

    loss = cycle_loss(actual, pred, reduction="mean")
    loss = jax.block_until_ready(loss)
    ref = jnp.mean(jnp.abs(actual - pred))
    assert jnp.allclose(loss, ref, rtol=1e-5, atol=1e-6), (loss, ref)

    # Ragged shape: exercises the in-kernel tail-masking / clamped-DMA path.
    shape2 = (3, 5, 7, 11)
    a2 = jax.random.normal(k3, shape2, dtype=jnp.float32)
    p2 = jax.random.normal(k4, shape2, dtype=jnp.float32)
    loss2 = jax.block_until_ready(cycle_loss(a2, p2, reduction="mean"))
    ref2 = jnp.mean(jnp.abs(a2 - p2))
    assert jnp.allclose(loss2, ref2, rtol=1e-5, atol=1e-6), (loss2, ref2)

    print("KERNEL_OK")
</pallas_src>

<mosaic_0001>
module attributes {stable_mosaic.version = 11 : i64} {
  func.func @_l1_partial_kernel(%arg0: i32, %arg1: i32, %arg2: memref<16x128xf32, #tpu.memory_space<vmem>>, %arg3: memref<16x128xf32, #tpu.memory_space<vmem>>, %arg4: memref<8x128xf32, #tpu.memory_space<vmem>>) attributes {dimension_semantics = [#tpu.dimension_semantics<parallel>, #tpu.dimension_semantics<arbitrary>], iteration_bounds = array<i64: 1, 1>, scalar_prefetch = 0 : i64, scratch_operands = 0 : i64, tpu.core_type = #tpu.core_type<tc>, window_params = [{transform_indices = @transform_0, window_bounds = array<i64: 16, 128>}, {transform_indices = @transform_1, window_bounds = array<i64: 16, 128>}, {transform_indices = @transform_2, window_bounds = array<i64: 8, 128>}]} {
    %c0_i32 = arith.constant 0 : i32
    %0 = arith.cmpi eq, %arg1, %c0_i32 : i32
    %1 = arith.extui %0 : i1 to i32
    %c0_i32_0 = arith.constant 0 : i32
    %2 = arith.cmpi ne, %1, %c0_i32_0 : i32
    scf.if %2 {
      %cst_8 = arith.constant 0.000000e+00 : f32
      %12 = vector.broadcast %cst_8 : f32 to vector<8x128xf32>
      %c0_9 = arith.constant 0 : index
      %c0_10 = arith.constant 0 : index
      %13 = vector.load %arg4[%c0_9, %c0_10] : memref<8x128xf32, #tpu.memory_space<vmem>>, vector<8x128xf32>
      tpu.vector_store %arg4[%c0_9, %c0_10], %12 {strides = array<i32>} : memref<8x128xf32, #tpu.memory_space<vmem>>, vector<8x128xf32>,
    } else {
    }
    %c0 = arith.constant 0 : index
    %c0_1 = arith.constant 0 : index
    %3 = vector.load %arg2[%c0, %c0_1] : memref<16x128xf32, #tpu.memory_space<vmem>>, vector<16x128xf32>
    %c0_2 = arith.constant 0 : index
    %c0_3 = arith.constant 0 : index
    %4 = vector.load %arg3[%c0_2, %c0_3] : memref<16x128xf32, #tpu.memory_space<vmem>>, vector<16x128xf32>
    %5 = arith.subf %3, %4 : vector<16x128xf32>
    %6 = math.absf %5 : vector<16x128xf32>
    %c0_4 = arith.constant 0 : index
    %c0_5 = arith.constant 0 : index
    %7 = vector.load %arg4[%c0_4, %c0_5] : memref<8x128xf32, #tpu.memory_space<vmem>>, vector<8x128xf32>
    %8 = vector.shape_cast %6 : vector<16x128xf32> to vector<2x8x128xf32>
    %cst = arith.constant dense<0.000000e+00> : vector<8x128xf32>
    %9 = vector.multi_reduction <add>, %8, %cst [0] : vector<2x8x128xf32> to vector<8x128xf32>
    %10 = arith.addf %7, %9 : vector<8x128xf32>
    %c0_6 = arith.constant 0 : index
    %c0_7 = arith.constant 0 : index
    %11 = vector.load %arg4[%c0_6, %c0_7] : memref<8x128xf32, #tpu.memory_space<vmem>>, vector<8x128xf32>
    tpu.vector_store %arg4[%c0_6, %c0_7], %10 {strides = array<i32>} : memref<8x128xf32, #tpu.memory_space<vmem>>, vector<8x128xf32>,
    return
  }
  func.func @transform_0(%arg0: i32, %arg1: i32) -> (i32, i32) {
    %c1_i32 = arith.constant 1 : i32
    %0 = arith.muli %arg0, %c1_i32 : i32
    %1 = arith.addi %0, %arg1 : i32
    %c0_i32 = arith.constant 0 : i32
    %2 = arith.minsi %1, %c0_i32 : i32
    %c0_i32_0 = arith.constant 0 : i32
    %c0_i32_1 = arith.constant 0 : i32
    return %2, %c0_i32_0 : i32, i32
  }
  func.func @transform_1(%arg0: i32, %arg1: i32) -> (i32, i32) {
    %c1_i32 = arith.constant 1 : i32
    %0 = arith.muli %arg0, %c1_i32 : i32
    %1 = arith.addi %0, %arg1 : i32
    %c0_i32 = arith.constant 0 : i32
    %2 = arith.minsi %1, %c0_i32 : i32
    %c0_i32_0 = arith.constant 0 : i32
    %c0_i32_1 = arith.constant 0 : i32
    return %2, %c0_i32_0 : i32, i32
  }
  func.func @transform_2(%arg0: i32, %arg1: i32) -> (i32, i32) {
    %c0_i32 = arith.constant 0 : i32
    %c0_i32_0 = arith.constant 0 : i32
    return %arg0, %c0_i32 : i32, i32
  }
}

</mosaic_0001>

<llo_original>
// kernel: tpu_custom_call.1
$region0: #{tpu_custom_call.1}
  #allocation0 [shape = 'u32[]', space=smem, size = 0x4, offset = 0x4, fixed_abs, tag = 'smem constant byte address 0x4 - core index']
  #allocation1 [shape = 'u32[72,128]{1,0:T(1,128)}', space=vmem, size = 0x9000, scoped, tag = 'internal scratch']
  %s0 = inlined_call_operand.hbm [shape: f32[16,128], index: 0, kind: input, shape index: {}]
  %s1 = inlined_call_operand.hbm [shape: f32[16,128], index: 1, kind: input, shape index: {}]
  %s2 = inlined_call_operand.hbm [shape: f32[8,128], index: 2, kind: output, shape index: {}]
  %s3 = sld [smem:[#allocation0]]
  $region30: #{tpu_custom_call.1} parent=0
    _
  %s5 = ssub.s32 1, %s3
  %s6 = scalar_select 0, %s5, %s3
  $region1: #{tpu_custom_call.1} parent=0
    #allocation2 [shape = 'u8[8192]{0}', space=vmem, size = 0x2000, scoped, tag = 'input window, operand 0, single buffered']
    #allocation3 [shape = 's32[1]{0}', space=sflag, size = 0x4, scoped, tag = 'scoped memory for tpu_custom_call.1']
    #allocation4 [shape = 's32[1]{0}', space=sflag, size = 0x4, scoped, tag = 'scoped memory for tpu_custom_call.1']
    #allocation5 [shape = 'u8[8192]{0}', space=vmem, size = 0x2000, scoped, tag = 'input window, operand 1, single buffered']
    #allocation6 [shape = 's32[1]{0}', space=sflag, size = 0x4, scoped, tag = 'scoped memory for tpu_custom_call.1']
    #allocation7 [shape = 'u8[4096]{0}', space=vmem, size = 0x1000, scoped, tag = 'output window, operand 0, single buffered']
    %7 = vsyncpa [#allocation3], 0
    %8 = vsyncpa [#allocation6], 0
    %9 = vsyncpa [#allocation4], 0
    // Predicated region
    $region2: #{tpu_custom_call.1} parent=1 // pred_check
      _
    $region3: #{tpu_custom_call.1} parent=1 // pred_check_branch
      %11 = sbr.rel (0) target = $region5
    $region4: #{tpu_custom_call.1} parent=1 // pred_region
      %s12 = sadd.s32 0, 0
      %p13 = scmp.lt.s32.totalorder %s12, 0
      %s14 = scalar_select %p13, %s12, 0
      %s15 = smul.u32 2, %s14
      %17 = vsyncadd [#allocation3], 0
      %s18 = smul.addr %s15, 8
      %s19 = scalar_lea.hbm %s0, %s18
      %s20 = sshll.u32 %s19, 4
      %s21 = int_to_ptr.hbm [resolvable:$true] %s20
      %s22 = sshll.u32 [#allocation2], 4
      %s23 = int_to_ptr.vmem [resolvable:$true] %s22
      %28 = dma.hbm_to_vmem [thread:$0]  %s21, 256, %s23, [#allocation3], 128, 128, 8
    $region5: #{tpu_custom_call.1} parent=1 // pred_fallthru
      _
    // Predicated region
    $region6: #{tpu_custom_call.1} parent=1 // pred_check
      _
    $region7: #{tpu_custom_call.1} parent=1 // pred_check_branch
      %30 = sbr.rel (0) target = $region9
    $region8: #{tpu_custom_call.1} parent=1 // pred_region
      %s31 = sadd.s32 0, 0
      %p32 = scmp.lt.s32.totalorder %s31, 0
      %s33 = scalar_select %p32, %s31, 0
      %s34 = smul.u32 2, %s33
      %36 = vsyncadd [#allocation6], 0
      %s37 = smul.addr %s34, 8
      %s38 = scalar_lea.hbm %s1, %s37
      %s39 = sshll.u32 %s38, 4
      %s40 = int_to_ptr.hbm [resolvable:$true] %s39
      %s41 = sshll.u32 [#allocation5], 4
      %s42 = int_to_ptr.vmem [resolvable:$true] %s41
      %47 = dma.hbm_to_vmem [thread:$0]  %s40, 256, %s42, [#allocation6], 128, 128, 8
    $region9: #{tpu_custom_call.1} parent=1 // pred_fallthru
      _
    // Predicated region
    $region10: #{tpu_custom_call.1} parent=1 // pred_check
      _
    $region11: #{tpu_custom_call.1} parent=1 // pred_check_branch
      %49 = sbr.rel (0) target = $region13
    $region12: #{tpu_custom_call.1} parent=1 // pred_region
      %51 = dma.done [#allocation3], 256
    $region13: #{tpu_custom_call.1} parent=1 // pred_fallthru
      _
    // Predicated region
    $region14: #{tpu_custom_call.1} parent=1 // pred_check
      _
    $region15: #{tpu_custom_call.1} parent=1 // pred_check_branch
      %53 = sbr.rel (0) target = $region17
    $region16: #{tpu_custom_call.1} parent=1 // pred_region
      %55 = dma.done [#allocation6], 256
    $region17: #{tpu_custom_call.1} parent=1 // pred_fallthru
      _
    %s56 = sadd.s32 0, 0
    %p57 = scmp.lt.s32.totalorder %s56, 0
    %s58 = scalar_select %p57, %s56, 0
    %s59 = smul.u32 2, %s58
    %s60 = sadd.s32 0, 0
    %p61 = scmp.lt.s32.totalorder %s60, 0
    %s62 = scalar_select %p61, %s60, 0
    %s63 = smul.u32 2, %s62
    %p64 = scmp.eq.s32.totalorder 0, 0
    // Predicated region
    $region18: #{tpu_custom_call.1} parent=1 // pred_check
      %p65 = pneg %p64
    $region19: #{tpu_custom_call.1} parent=1 // pred_check_branch
      %67 = sbr.rel (%p65) target = $region21
    $region20: #{tpu_custom_call.1} parent=1 // pred_region
      %68 = vst [vmem:[#allocation7] sm:$0xff] 0.0
    $region21: #{tpu_custom_call.1} parent=1 // pred_fallthru
      _
    %v69 = vld [vmem:[#allocation2] sm:$0xff]
    %v70 = vld [vmem:[#allocation2 + $0x8] sm:$0xff]
    %v71 = vld [vmem:[#allocation5] sm:$0xff]
    %v72 = vld [vmem:[#allocation5 + $0x8] sm:$0xff]
    %v73 = vsub.f32 %v69, %v71
    %v74 = vsub.f32 %v70, %v72
    %v75 = vand.u32 2147483647, %v73
    %v76 = vand.u32 2147483647, %v74
    %v77 = vld [vmem:[#allocation7] sm:$0xff]
    %v78 = vadd.f32 %v75, %v76
    %v79 = vadd.f32 %v77, %v78
    %80 = vst [vmem:[#allocation7] sm:$0xff] %v79
    // Predicated region
    $region22: #{tpu_custom_call.1} parent=1 // pred_check
      _
    $region23: #{tpu_custom_call.1} parent=1 // pred_check_branch
      %82 = sbr.rel (0) target = $region25
    $region24: #{tpu_custom_call.1} parent=1 // pred_region
      %84 = vsyncadd [#allocation4], 0
      %s86 = sshll.u32 [#allocation7], 4
      %s87 = int_to_ptr.vmem [resolvable:$true] %s86
      %s88 = sshll.u32 %s2, 4
      %s89 = int_to_ptr.hbm [resolvable:$true] %s88
      %91 = dma.vmem_to_hbm [thread:$0]  %s87, 128, %s89, [#allocation4]
    $region25: #{tpu_custom_call.1} parent=1 // pred_fallthru
      _
    // Predicated region
    $region26: #{tpu_custom_call.1} parent=1 // pred_check
      _
    $region27: #{tpu_custom_call.1} parent=1 // pred_check_branch
      %93 = sbr.rel (0) target = $region29
    $region28: #{tpu_custom_call.1} parent=1 // pred_region
      %95 = dma.done [#allocation4], 128
    $region29: #{tpu_custom_call.1} parent=1 // pred_fallthru
      _
    %96 = vsyncpa [#allocation3], 1
    %97 = vsyncpa [#allocation6], 1
    %98 = vsyncpa [#allocation4], 1

</llo_original>
